<compile_context>
chip_gen: v7x
topology: tpu7x:2x2x1
jax: 0.10.0
libtpu: 0.0.40
codegen_flags: <defaults>
</compile_context>

<pallas_src>
import functools

import jax
import jax.numpy as jnp
from jax.experimental import pallas as pl
from jax.experimental.pallas import tpu as pltpu


def _round_up(v, m):
    return (v + m - 1) // m * m


# -----------------------------------------------------------------------------
# Kernel 1: weight centralization (one shot, row-tiled so any Cout / K fits).
# -----------------------------------------------------------------------------
def _center_weight_kernel(w_ref, o_ref):
    w = w_ref[...].astype(jnp.float32)                       # (TMc, K)
    o_ref[...] = (w - jnp.mean(w, axis=1, keepdims=True)).astype(o_ref.dtype)


def _center_weight_rows(w2d):
    """Per-output-channel mean subtraction, tiled over rows (independent rows)."""
    rows, K = w2d.shape                                       # rows is a multiple of 8
    tm = min(rows, 64)
    while tm > 8 and tm * K * 16 > (8 << 20):                 # in+out, double-buffered
        tm //= 2
    tm = max(8, (tm // 8) * 8)
    return pl.pallas_call(
        _center_weight_kernel,
        out_shape=jax.ShapeDtypeStruct((rows, K), w2d.dtype),
        grid=(pl.cdiv(rows, tm),),
        in_specs=[pl.BlockSpec((tm, K), lambda i: (i, 0))],
        out_specs=pl.BlockSpec((tm, K), lambda i: (i, 0)),
    )(w2d)


# -----------------------------------------------------------------------------
# Kernel 2: fused direct conv (sum of KH*KW shifted sub-matmuls, no im2col).
#
#   out1[n, co, q] = sum_c sum_{i,j} Wc[co,c,i,j] * xflat[n, c, q + (i*Wp + j)*dil]
#
# xflat is the padded input flattened over (H, W); q enumerates the stride-1
# output plane of row width Wp (the last Wp-OW1 columns of each row are
# wrap-around garbage, trimmed outside the kernel).  The (i, j) tap loop is a
# static unrolled loop, so every x slice has a static offset; the input-channel
# grid axis is the innermost reduction with an f32 VMEM accumulator.
# -----------------------------------------------------------------------------
def _make_conv_kernel(KH, KW, dil, Wp, Mout, has_bias):
    def kernel(*refs):
        if has_bias:
            w_ref, x_ref, b_ref, o_ref, acc_ref = refs
        else:
            w_ref, x_ref, o_ref, acc_ref = refs
        c = pl.program_id(2)

        @pl.when(c == 0)
        def _init():
            if has_bias:
                # Bias folded into the accumulator init (off the epilogue path).
                acc_ref[...] = jnp.zeros_like(acc_ref) + b_ref[...]
            else:
                acc_ref[...] = jnp.zeros_like(acc_ref)

        for i in range(KH):                        # static, unrolled: KH*KW taps
            for j in range(KW):
                off = (i * Wp + j) * dil           # static lane offset
                acc_ref[...] += jnp.dot(
                    w_ref[i * KW + j],             # (TCo, TC)
                    x_ref[:, off:off + Mout],      # (TC, Mout) shifted window
                    preferred_element_type=jnp.float32,
                )

        @pl.when(c == pl.num_programs(2) - 1)
        def _store():
            o_ref[...] = acc_ref[...].astype(o_ref.dtype)

    return kernel


@functools.partial(jax.jit, static_argnames=("stride", "padding", "dilation", "groups"))
def cen_conv2d(x, weight, bias=None, stride=1, padding=0, dilation=1, groups=1):
    """Forward pass of CenConv2d. x: (N, Cin, H, W), weight: (Cout, Cin/groups, KH, KW)."""
    assert groups == 1, "TODO(synk): grouped conv not implemented (module default is 1)."
    N, Cin, H, W = x.shape
    Cout, Cin_w, KH, KW = weight.shape
    assert Cin_w == Cin
    s, p, d = stride, padding, dilation
    kk = KH * KW
    K = Cin * kk

    out_dtype = x.dtype
    itemsize = jnp.dtype(x.dtype).itemsize
    w_isz = jnp.dtype(weight.dtype).itemsize
    out_isz = jnp.dtype(out_dtype).itemsize
    sub = 8 if itemsize >= 4 else 16              # sublane multiple

    # --- geometry of the stride-1 "full plane" formulation -------------------
    Hp, Wp = H + 2 * p, W + 2 * p
    OH1, OW1 = Hp - d * (KH - 1), Wp - d * (KW - 1)      # stride-1 output dims
    OH, OW = (OH1 - 1) // s + 1, (OW1 - 1) // s + 1      # true output dims
    extra_rows = ((KW - 1) * d + Wp - 1) // Wp           # halo slack for the last tap
    L = (Hp + extra_rows) * Wp                           # flattened padded plane
    Mout = OH1 * Wp                                      # stride-1 plane per block

    # --- tile selection (VMEM-budgeted; safe on v5e / v6e / v7x) -------------
    X_BLOCK_BUDGET = 8 << 20
    Cpad = _round_up(Cin, sub)
    if Cpad <= 128 or Cpad * L * itemsize <= X_BLOCK_BUDGET:
        TC = Cpad                                        # single reduction step
    else:
        TC = 256 if 256 * L * itemsize <= X_BLOCK_BUDGET else 128
        Cpad = _round_up(Cin, TC)

    O_BLOCK_BUDGET = 6 << 20
    per_co = Mout * (out_isz + 4)                        # out block + f32 acc, per row
    Cout_p = _round_up(Cout, sub)
    if Cout_p <= 256 and Cout_p * per_co <= O_BLOCK_BUDGET:
        TCo = Cout_p
    else:
        TCo = 256
        while TCo > 8 and TCo * per_co > O_BLOCK_BUDGET:
            TCo //= 2
        TCo = max(8, (TCo // 8) * 8)
        Cout_p = _round_up(Cout, TCo)

    # --- 1) centered weight, once (row-tiled Pallas kernel) ------------------
    w2d = weight.reshape(Cout, K)
    if Cout_p > Cout:
        w2d = jnp.pad(w2d, ((0, Cout_p - Cout), (0, 0)))     # zero rows stay zero
    wc2d = _center_weight_rows(w2d)                          # (Cout_p, K)
    wc = wc2d.reshape(Cout_p, Cin, KH, KW)
    if Cpad > Cin:
        wc = jnp.pad(wc, ((0, 0), (0, Cpad - Cin), (0, 0), (0, 0)))
    wt = jnp.transpose(wc, (2, 3, 0, 1)).reshape(kk, Cout_p, Cpad)   # (KH*KW, Cout_p, Cpad)

    # --- 2) padded + flattened input (one cheap pad, NO im2col) --------------
    xp = jnp.pad(x, ((0, 0), (0, Cpad - Cin), (p, p + extra_rows), (p, p)))
    xflat = xp.reshape(N, Cpad, L)

    has_bias = bias is not None
    args = [wt, xflat]
    in_specs = [
        pl.BlockSpec((kk, TCo, TC), lambda n, i, c: (0, i, c)),      # weight taps
        pl.BlockSpec((None, TC, L), lambda n, i, c: (n, c, 0)),      # input plane
    ]
    if has_bias:
        bias2d = jnp.pad(bias.astype(jnp.float32).reshape(Cout, 1),
                         ((0, Cout_p - Cout), (0, 0)))
        args.append(bias2d)
        in_specs.append(pl.BlockSpec((TCo, 1), lambda n, i, c: (i, 0)))

    n_co = Cout_p // TCo
    n_c = Cpad // TC
    grid = (N, n_co, n_c)

    vmem_need = (2 * TC * L * itemsize            # double-buffered x plane
                 + 2 * kk * TCo * TC * w_isz      # double-buffered weight taps
                 + 2 * TCo * Mout * out_isz       # double-buffered output block
                 + TCo * Mout * 4                 # f32 accumulator
                 + 2 * TC * Mout * itemsize)      # shifted-slice temporaries
    if has_bias:
        vmem_need += 2 * TCo * 4
    vmem_limit = int(min(max(2 * vmem_need, 32 << 20), 48 << 20))

    cost = pl.CostEstimate(
        flops=2 * N * Cout_p * Cpad * kk * Mout,
        transcendentals=0,
        bytes_accessed=(N * n_co * Cpad * L * itemsize          # x re-read per Cout tile
                        + N * kk * Cout_p * Cpad * w_isz        # weight blocks
                        + N * Cout_p * Mout * out_isz           # output write
                        + (N * n_c * Cout_p * 4 if has_bias else 0)),
    )

    out_full = pl.pallas_call(
        _make_conv_kernel(KH, KW, d, Wp, Mout, has_bias),
        out_shape=jax.ShapeDtypeStruct((N, Cout_p, Mout), out_dtype),
        grid_spec=pltpu.PrefetchScalarGridSpec(
            num_scalar_prefetch=0,
            grid=grid,
            in_specs=in_specs,
            out_specs=pl.BlockSpec((None, TCo, Mout), lambda n, i, c: (n, i, 0)),
            scratch_shapes=[pltpu.VMEM((TCo, Mout), jnp.float32)],
        ),
        compiler_params=pltpu.CompilerParams(
            dimension_semantics=("parallel", "parallel", "arbitrary"),
            vmem_limit_bytes=vmem_limit,
        ),
        cost_estimate=cost,
    )(*args)

    # Stride-1 plane -> final NCHW output: trim wrap-around columns / padded
    # Cout rows, and subsample for stride > 1.
    out = out_full.reshape(N, Cout_p, OH1, Wp)
    out = out[:, :Cout, ::s, ::s][:, :, :OH, :OW]
    return out


if __name__ == "__main__":
    # Module config (CenConv2d defaults): kernel_size=3, stride=1, padding=0,
    # dilation=1, groups=1, bias=False.
    N, Cin, H, W = 2, 4, 16, 16
    Cout, KH, KW = 8, 3, 3

    key = jax.random.PRNGKey(0)
    kx, kw, kb = jax.random.split(key, 3)
    x = jax.random.normal(kx, (N, Cin, H, W), dtype=jnp.float32)
    weight = jax.random.normal(kw, (Cout, Cin, KH, KW), dtype=jnp.float32)

    def ref_conv(x, weight, bias, stride, padding):
        w_mean = weight.mean(axis=(1, 2, 3), keepdims=True)
        out = jax.lax.conv_general_dilated(
            x, weight - w_mean,
            window_strides=(stride, stride),
            padding=[(padding, padding), (padding, padding)],
            dimension_numbers=("NCHW", "OIHW", "NCHW"))
        if bias is not None:
            out = out + bias.reshape(1, -1, 1, 1)
        return out

    # Default config (stride=1, padding=0, no bias).
    out = jax.block_until_ready(cen_conv2d(x, weight))
    ref = ref_conv(x, weight, None, 1, 0)
    assert out.shape == (N, Cout, H - KH + 1, W - KW + 1)
    assert jnp.allclose(out, ref, rtol=1e-4, atol=1e-4), "mismatch vs reference conv"

    # Also exercise bias / padding / stride (stride>1 uses the subsampled plane).
    bias = jax.random.normal(kb, (Cout,), dtype=jnp.float32)
    out2 = jax.block_until_ready(
        cen_conv2d(x, weight, bias, stride=2, padding=1, dilation=1, groups=1))
    ref2 = ref_conv(x, weight, bias, 2, 1)
    assert out2.shape == ref2.shape
    assert jnp.allclose(out2, ref2, rtol=1e-4, atol=1e-4), "mismatch (stride/pad/bias)"

    print("KERNEL_OK")
</pallas_src>

<mosaic_0001>
module attributes {stable_mosaic.version = 11 : i64} {
  func.func @_center_weight_kernel(%arg0: i32, %arg1: memref<8x36xf32, #tpu.memory_space<vmem>>, %arg2: memref<8x36xf32, #tpu.memory_space<vmem>>) attributes {dimension_semantics = [#tpu.dimension_semantics<arbitrary>], iteration_bounds = array<i64: 1>, scalar_prefetch = 0 : i64, scratch_operands = 0 : i64, tpu.core_type = #tpu.core_type<tc>, window_params = [{transform_indices = @transform_0, window_bounds = array<i64: 8, 36>}, {transform_indices = @transform_1, window_bounds = array<i64: 8, 36>}]} {
    %c0 = arith.constant 0 : index
    %c0_0 = arith.constant 0 : index
    %0 = vector.load %arg1[%c0, %c0_0] : memref<8x36xf32, #tpu.memory_space<vmem>>, vector<8x36xf32>
    %cst = arith.constant dense<0.000000e+00> : vector<8xf32>
    %1 = vector.multi_reduction <add>, %0, %cst [1] : vector<8x36xf32> to vector<8xf32>
    %2 = vector.shape_cast %1 : vector<8xf32> to vector<8x1xf32>
    %cst_1 = arith.constant 3.600000e+01 : f32
    %3 = vector.broadcast %cst_1 : f32 to vector<8x1xf32>
    %4 = arith.divf %2, %3 : vector<8x1xf32>
    %5 = vector.broadcast %4 : vector<8x1xf32> to vector<8x36xf32>
    %6 = arith.subf %0, %5 : vector<8x36xf32>
    %c0_2 = arith.constant 0 : index
    %c0_3 = arith.constant 0 : index
    %7 = vector.load %arg2[%c0_2, %c0_3] : memref<8x36xf32, #tpu.memory_space<vmem>>, vector<8x36xf32>
    tpu.vector_store %arg2[%c0_2, %c0_3], %6 {strides = array<i32>} : memref<8x36xf32, #tpu.memory_space<vmem>>, vector<8x36xf32>,
    return
  }
  func.func @transform_0(%arg0: i32) -> (i32, i32) {
    %c0_i32 = arith.constant 0 : i32
    %c0_i32_0 = arith.constant 0 : i32
    return %arg0, %c0_i32 : i32, i32
  }
  func.func @transform_1(%arg0: i32) -> (i32, i32) {
    %c0_i32 = arith.constant 0 : i32
    %c0_i32_0 = arith.constant 0 : i32
    return %arg0, %c0_i32 : i32, i32
  }
}

module attributes {stable_mosaic.version = 11 : i64} {
  func.func @kernel(%arg0: i32, %arg1: i32, %arg2: i32, %arg3: memref<9x8x8xf32, #tpu.memory_space<vmem>>, %arg4: memref<1x8x272xf32, #tpu.memory_space<vmem>>, %arg5: memref<1x8x224xf32, #tpu.memory_space<vmem>>, %arg6: memref<8x224xf32, #tpu.memory_space<vmem>>) attributes {dimension_semantics = [#tpu.dimension_semantics<parallel>, #tpu.dimension_semantics<parallel>, #tpu.dimension_semantics<arbitrary>], iteration_bounds = array<i64: 2, 1, 1>, scalar_prefetch = 0 : i64, scratch_operands = 1 : i64, tpu.core_type = #tpu.core_type<tc>, window_params = [{transform_indices = @transform_0, window_bounds = array<i64: 9, 8, 8>}, {transform_indices = @transform_1, window_bounds = array<i64: 1, 8, 272>}, {transform_indices = @transform_2, window_bounds = array<i64: 1, 8, 224>}]} {
    %c0_i32 = arith.constant 0 : i32
    %0 = arith.cmpi eq, %arg2, %c0_i32 : i32
    %1 = arith.extui %0 : i1 to i32
    %c0_i32_0 = arith.constant 0 : i32
    %2 = arith.cmpi ne, %1, %c0_i32_0 : i32
    scf.if %2 {
      %cst_86 = arith.constant 0.000000e+00 : f32
      %78 = vector.broadcast %cst_86 : f32 to vector<8x224xf32>
      %c0_87 = arith.constant 0 : index
      %c0_88 = arith.constant 0 : index
      %79 = vector.load %arg6[%c0_87, %c0_88] : memref<8x224xf32, #tpu.memory_space<vmem>>, vector<8x224xf32>
      tpu.vector_store %arg6[%c0_87, %c0_88], %78 {strides = array<i32>} : memref<8x224xf32, #tpu.memory_space<vmem>>, vector<8x224xf32>,
    } else {
    }
    %c0 = arith.constant 0 : index
    %c0_1 = arith.constant 0 : index
    %3 = vector.load %arg6[%c0, %c0_1] : memref<8x224xf32, #tpu.memory_space<vmem>>, vector<8x224xf32>
    %c0_2 = arith.constant 0 : index
    %c0_3 = arith.constant 0 : index
    %c0_4 = arith.constant 0 : index
    %4 = vector.load %arg3[%c0_2, %c0_3, %c0_4] : memref<9x8x8xf32, #tpu.memory_space<vmem>>, vector<1x8x8xf32>
    %5 = vector.shape_cast %4 : vector<1x8x8xf32> to vector<8x8xf32>
    %c0_5 = arith.constant 0 : index
    %c0_6 = arith.constant 0 : index
    %c0_7 = arith.constant 0 : index
    %6 = vector.load %arg4[%c0_5, %c0_6, %c0_7] : memref<1x8x272xf32, #tpu.memory_space<vmem>>, vector<1x8x224xf32>
    %7 = vector.shape_cast %6 : vector<1x8x224xf32> to vector<8x224xf32>
    %cst = arith.constant dense<0.000000e+00> : vector<8x224xf32>
    %8 = tpu.matmul %5, %7, %cst {dimension_numbers = #tpu.dot_dimension_numbers<[1], [0], [0], [1], [0, 0, 1, 1], [], []>} : vector<8x8xf32>, vector<8x224xf32>, vector<8x224xf32> -> vector<8x224xf32>
    %9 = arith.addf %3, %8 : vector<8x224xf32>
    %c0_8 = arith.constant 0 : index
    %c0_9 = arith.constant 0 : index
    %10 = vector.load %arg6[%c0_8, %c0_9] : memref<8x224xf32, #tpu.memory_space<vmem>>, vector<8x224xf32>
    tpu.vector_store %arg6[%c0_8, %c0_9], %9 {strides = array<i32>} : memref<8x224xf32, #tpu.memory_space<vmem>>, vector<8x224xf32>,
    %c0_10 = arith.constant 0 : index
    %c0_11 = arith.constant 0 : index
    %11 = vector.load %arg6[%c0_10, %c0_11] : memref<8x224xf32, #tpu.memory_space<vmem>>, vector<8x224xf32>
    %c1 = arith.constant 1 : index
    %c0_12 = arith.constant 0 : index
    %c0_13 = arith.constant 0 : index
    %12 = vector.load %arg3[%c1, %c0_12, %c0_13] : memref<9x8x8xf32, #tpu.memory_space<vmem>>, vector<1x8x8xf32>
    %13 = vector.shape_cast %12 : vector<1x8x8xf32> to vector<8x8xf32>
    %c0_14 = arith.constant 0 : index
    %c0_15 = arith.constant 0 : index
    %c1_16 = arith.constant 1 : index
    %14 = vector.load %arg4[%c0_14, %c0_15, %c1_16] : memref<1x8x272xf32, #tpu.memory_space<vmem>>, vector<1x8x224xf32>
    %15 = vector.shape_cast %14 : vector<1x8x224xf32> to vector<8x224xf32>
    %cst_17 = arith.constant dense<0.000000e+00> : vector<8x224xf32>
    %16 = tpu.matmul %13, %15, %cst_17 {dimension_numbers = #tpu.dot_dimension_numbers<[1], [0], [0], [1], [0, 0, 1, 1], [], []>} : vector<8x8xf32>, vector<8x224xf32>, vector<8x224xf32> -> vector<8x224xf32>
    %17 = arith.addf %11, %16 : vector<8x224xf32>
    %c0_18 = arith.constant 0 : index
    %c0_19 = arith.constant 0 : index
    %18 = vector.load %arg6[%c0_18, %c0_19] : memref<8x224xf32, #tpu.memory_space<vmem>>, vector<8x224xf32>
    tpu.vector_store %arg6[%c0_18, %c0_19], %17 {strides = array<i32>} : memref<8x224xf32, #tpu.memory_space<vmem>>, vector<8x224xf32>,
    %c0_20 = arith.constant 0 : index
    %c0_21 = arith.constant 0 : index
    %19 = vector.load %arg6[%c0_20, %c0_21] : memref<8x224xf32, #tpu.memory_space<vmem>>, vector<8x224xf32>
    %c2 = arith.constant 2 : index
    %c0_22 = arith.constant 0 : index
    %c0_23 = arith.constant 0 : index
    %20 = vector.load %arg3[%c2, %c0_22, %c0_23] : memref<9x8x8xf32, #tpu.memory_space<vmem>>, vector<1x8x8xf32>
    %21 = vector.shape_cast %20 : vector<1x8x8xf32> to vector<8x8xf32>
    %c0_24 = arith.constant 0 : index
    %c0_25 = arith.constant 0 : index
    %c2_26 = arith.constant 2 : index
    %22 = vector.load %arg4[%c0_24, %c0_25, %c2_26] : memref<1x8x272xf32, #tpu.memory_space<vmem>>, vector<1x8x224xf32>
    %23 = vector.shape_cast %22 : vector<1x8x224xf32> to vector<8x224xf32>
    %cst_27 = arith.constant dense<0.000000e+00> : vector<8x224xf32>
    %24 = tpu.matmul %21, %23, %cst_27 {dimension_numbers = #tpu.dot_dimension_numbers<[1], [0], [0], [1], [0, 0, 1, 1], [], []>} : vector<8x8xf32>, vector<8x224xf32>, vector<8x224xf32> -> vector<8x224xf32>
    %25 = arith.addf %19, %24 : vector<8x224xf32>
    %c0_28 = arith.constant 0 : index
    %c0_29 = arith.constant 0 : index
    %26 = vector.load %arg6[%c0_28, %c0_29] : memref<8x224xf32, #tpu.memory_space<vmem>>, vector<8x224xf32>
    tpu.vector_store %arg6[%c0_28, %c0_29], %25 {strides = array<i32>} : memref<8x224xf32, #tpu.memory_space<vmem>>, vector<8x224xf32>,
    %c0_30 = arith.constant 0 : index
    %c0_31 = arith.constant 0 : index
    %27 = vector.load %arg6[%c0_30, %c0_31] : memref<8x224xf32, #tpu.memory_space<vmem>>, vector<8x224xf32>
    %c3 = arith.constant 3 : index
    %c0_32 = arith.constant 0 : index
    %c0_33 = arith.constant 0 : index
    %28 = vector.load %arg3[%c3, %c0_32, %c0_33] : memref<9x8x8xf32, #tpu.memory_space<vmem>>, vector<1x8x8xf32>
    %29 = vector.shape_cast %28 : vector<1x8x8xf32> to vector<8x8xf32>
    %c0_34 = arith.constant 0 : index
    %c0_35 = arith.constant 0 : index
    %c16 = arith.constant 16 : index
    %30 = vector.load %arg4[%c0_34, %c0_35, %c16] : memref<1x8x272xf32, #tpu.memory_space<vmem>>, vector<1x8x224xf32>
    %31 = vector.shape_cast %30 : vector<1x8x224xf32> to vector<8x224xf32>
    %cst_36 = arith.constant dense<0.000000e+00> : vector<8x224xf32>
    %32 = tpu.matmul %29, %31, %cst_36 {dimension_numbers = #tpu.dot_dimension_numbers<[1], [0], [0], [1], [0, 0, 1, 1], [], []>} : vector<8x8xf32>, vector<8x224xf32>, vector<8x224xf32> -> vector<8x224xf32>
    %33 = arith.addf %27, %32 : vector<8x224xf32>
    %c0_37 = arith.constant 0 : index
    %c0_38 = arith.constant 0 : index
    %34 = vector.load %arg6[%c0_37, %c0_38] : memref<8x224xf32, #tpu.memory_space<vmem>>, vector<8x224xf32>
    tpu.vector_store %arg6[%c0_37, %c0_38], %33 {strides = array<i32>} : memref<8x224xf32, #tpu.memory_space<vmem>>, vector<8x224xf32>,
    %c0_39 = arith.constant 0 : index
    %c0_40 = arith.constant 0 : index
    %35 = vector.load %arg6[%c0_39, %c0_40] : memref<8x224xf32, #tpu.memory_space<vmem>>, vector<8x224xf32>
    %c4 = arith.constant 4 : index
    %c0_41 = arith.constant 0 : index
    %c0_42 = arith.constant 0 : index
    %36 = vector.load %arg3[%c4, %c0_41, %c0_42] : memref<9x8x8xf32, #tpu.memory_space<vmem>>, vector<1x8x8xf32>
    %37 = vector.shape_cast %36 : vector<1x8x8xf32> to vector<8x8xf32>
    %c0_43 = arith.constant 0 : index
    %c0_44 = arith.constant 0 : index
    %c17 = arith.constant 17 : index
    %38 = vector.load %arg4[%c0_43, %c0_44, %c17] : memref<1x8x272xf32, #tpu.memory_space<vmem>>, vector<1x8x224xf32>
    %39 = vector.shape_cast %38 : vector<1x8x224xf32> to vector<8x224xf32>
    %cst_45 = arith.constant dense<0.000000e+00> : vector<8x224xf32>
    %40 = tpu.matmul %37, %39, %cst_45 {dimension_numbers = #tpu.dot_dimension_numbers<[1], [0], [0], [1], [0, 0, 1, 1], [], []>} : vector<8x8xf32>, vector<8x224xf32>, vector<8x224xf32> -> vector<8x224xf32>
    %41 = arith.addf %35, %40 : vector<8x224xf32>
    %c0_46 = arith.constant 0 : index
    %c0_47 = arith.constant 0 : index
    %42 = vector.load %arg6[%c0_46, %c0_47] : memref<8x224xf32, #tpu.memory_space<vmem>>, vector<8x224xf32>
    tpu.vector_store %arg6[%c0_46, %c0_47], %41 {strides = array<i32>} : memref<8x224xf32, #tpu.memory_space<vmem>>, vector<8x224xf32>,
    %c0_48 = arith.constant 0 : index
    %c0_49 = arith.constant 0 : index
    %43 = vector.load %arg6[%c0_48, %c0_49] : memref<8x224xf32, #tpu.memory_space<vmem>>, vector<8x224xf32>
    %c5 = arith.constant 5 : index
    %c0_50 = arith.constant 0 : index
    %c0_51 = arith.constant 0 : index
    %44 = vector.load %arg3[%c5, %c0_50, %c0_51] : memref<9x8x8xf32, #tpu.memory_space<vmem>>, vector<1x8x8xf32>
    %45 = vector.shape_cast %44 : vector<1x8x8xf32> to vector<8x8xf32>
    %c0_52 = arith.constant 0 : index
    %c0_53 = arith.constant 0 : index
    %c18 = arith.constant 18 : index
    %46 = vector.load %arg4[%c0_52, %c0_53, %c18] : memref<1x8x272xf32, #tpu.memory_space<vmem>>, vector<1x8x224xf32>
    %47 = vector.shape_cast %46 : vector<1x8x224xf32> to vector<8x224xf32>
    %cst_54 = arith.constant dense<0.000000e+00> : vector<8x224xf32>
    %48 = tpu.matmul %45, %47, %cst_54 {dimension_numbers = #tpu.dot_dimension_numbers<[1], [0], [0], [1], [0, 0, 1, 1], [], []>} : vector<8x8xf32>, vector<8x224xf32>, vector<8x224xf32> -> vector<8x224xf32>
    %49 = arith.addf %43, %48 : vector<8x224xf32>
    %c0_55 = arith.constant 0 : index
    %c0_56 = arith.constant 0 : index
    %50 = vector.load %arg6[%c0_55, %c0_56] : memref<8x224xf32, #tpu.memory_space<vmem>>, vector<8x224xf32>
    tpu.vector_store %arg6[%c0_55, %c0_56], %49 {strides = array<i32>} : memref<8x224xf32, #tpu.memory_space<vmem>>, vector<8x224xf32>,
    %c0_57 = arith.constant 0 : index
    %c0_58 = arith.constant 0 : index
    %51 = vector.load %arg6[%c0_57, %c0_58] : memref<8x224xf32, #tpu.memory_space<vmem>>, vector<8x224xf32>
    %c6 = arith.constant 6 : index
    %c0_59 = arith.constant 0 : index
    %c0_60 = arith.constant 0 : index
    %52 = vector.load %arg3[%c6, %c0_59, %c0_60] : memref<9x8x8xf32, #tpu.memory_space<vmem>>, vector<1x8x8xf32>
    %53 = vector.shape_cast %52 : vector<1x8x8xf32> to vector<8x8xf32>
    %c0_61 = arith.constant 0 : index
    %c0_62 = arith.constant 0 : index
    %c32 = arith.constant 32 : index
    %54 = vector.load %arg4[%c0_61, %c0_62, %c32] : memref<1x8x272xf32, #tpu.memory_space<vmem>>, vector<1x8x224xf32>
    %55 = vector.shape_cast %54 : vector<1x8x224xf32> to vector<8x224xf32>
    %cst_63 = arith.constant dense<0.000000e+00> : vector<8x224xf32>
    %56 = tpu.matmul %53, %55, %cst_63 {dimension_numbers = #tpu.dot_dimension_numbers<[1], [0], [0], [1], [0, 0, 1, 1], [], []>} : vector<8x8xf32>, vector<8x224xf32>, vector<8x224xf32> -> vector<8x224xf32>
    %57 = arith.addf %51, %56 : vector<8x224xf32>
    %c0_64 = arith.constant 0 : index
    %c0_65 = arith.constant 0 : index
    %58 = vector.load %arg6[%c0_64, %c0_65] : memref<8x224xf32, #tpu.memory_space<vmem>>, vector<8x224xf32>
    tpu.vector_store %arg6[%c0_64, %c0_65], %57 {strides = array<i32>} : memref<8x224xf32, #tpu.memory_space<vmem>>, vector<8x224xf32>,
    %c0_66 = arith.constant 0 : index
    %c0_67 = arith.constant 0 : index
    %59 = vector.load %arg6[%c0_66, %c0_67] : memref<8x224xf32, #tpu.memory_space<vmem>>, vector<8x224xf32>
    %c7 = arith.constant 7 : index
    %c0_68 = arith.constant 0 : index
    %c0_69 = arith.constant 0 : index
    %60 = vector.load %arg3[%c7, %c0_68, %c0_69] : memref<9x8x8xf32, #tpu.memory_space<vmem>>, vector<1x8x8xf32>
    %61 = vector.shape_cast %60 : vector<1x8x8xf32> to vector<8x8xf32>
    %c0_70 = arith.constant 0 : index
    %c0_71 = arith.constant 0 : index
    %c33 = arith.constant 33 : index
    %62 = vector.load %arg4[%c0_70, %c0_71, %c33] : memref<1x8x272xf32, #tpu.memory_space<vmem>>, vector<1x8x224xf32>
    %63 = vector.shape_cast %62 : vector<1x8x224xf32> to vector<8x224xf32>
    %cst_72 = arith.constant dense<0.000000e+00> : vector<8x224xf32>
    %64 = tpu.matmul %61, %63, %cst_72 {dimension_numbers = #tpu.dot_dimension_numbers<[1], [0], [0], [1], [0, 0, 1, 1], [], []>} : vector<8x8xf32>, vector<8x224xf32>, vector<8x224xf32> -> vector<8x224xf32>
    %65 = arith.addf %59, %64 : vector<8x224xf32>
    %c0_73 = arith.constant 0 : index
    %c0_74 = arith.constant 0 : index
    %66 = vector.load %arg6[%c0_73, %c0_74] : memref<8x224xf32, #tpu.memory_space<vmem>>, vector<8x224xf32>
    tpu.vector_store %arg6[%c0_73, %c0_74], %65 {strides = array<i32>} : memref<8x224xf32, #tpu.memory_space<vmem>>, vector<8x224xf32>,
    %c0_75 = arith.constant 0 : index
    %c0_76 = arith.constant 0 : index
    %67 = vector.load %arg6[%c0_75, %c0_76] : memref<8x224xf32, #tpu.memory_space<vmem>>, vector<8x224xf32>
    %c8 = arith.constant 8 : index
    %c0_77 = arith.constant 0 : index
    %c0_78 = arith.constant 0 : index
    %68 = vector.load %arg3[%c8, %c0_77, %c0_78] : memref<9x8x8xf32, #tpu.memory_space<vmem>>, vector<1x8x8xf32>
    %69 = vector.shape_cast %68 : vector<1x8x8xf32> to vector<8x8xf32>
    %c0_79 = arith.constant 0 : index
    %c0_80 = arith.constant 0 : index
    %c34 = arith.constant 34 : index
    %70 = vector.load %arg4[%c0_79, %c0_80, %c34] : memref<1x8x272xf32, #tpu.memory_space<vmem>>, vector<1x8x224xf32>
    %71 = vector.shape_cast %70 : vector<1x8x224xf32> to vector<8x224xf32>
    %cst_81 = arith.constant dense<0.000000e+00> : vector<8x224xf32>
    %72 = tpu.matmul %69, %71, %cst_81 {dimension_numbers = #tpu.dot_dimension_numbers<[1], [0], [0], [1], [0, 0, 1, 1], [], []>} : vector<8x8xf32>, vector<8x224xf32>, vector<8x224xf32> -> vector<8x224xf32>
    %73 = arith.addf %67, %72 : vector<8x224xf32>
    %c0_82 = arith.constant 0 : index
    %c0_83 = arith.constant 0 : index
    %74 = vector.load %arg6[%c0_82, %c0_83] : memref<8x224xf32, #tpu.memory_space<vmem>>, vector<8x224xf32>
    tpu.vector_store %arg6[%c0_82, %c0_83], %73 {strides = array<i32>} : memref<8x224xf32, #tpu.memory_space<vmem>>, vector<8x224xf32>,
    %c0_i32_84 = arith.constant 0 : i32
    %75 = arith.cmpi eq, %arg2, %c0_i32_84 : i32
    %76 = arith.extui %75 : i1 to i32
    %c0_i32_85 = arith.constant 0 : i32
    %77 = arith.cmpi ne, %76, %c0_i32_85 : i32
    scf.if %77 {
      %c0_86 = arith.constant 0 : index
      %c0_87 = arith.constant 0 : index
      %78 = vector.load %arg6[%c0_86, %c0_87] : memref<8x224xf32, #tpu.memory_space<vmem>>, vector<8x224xf32>
      %c0_88 = arith.constant 0 : index
      %c0_89 = arith.constant 0 : index
      %c0_90 = arith.constant 0 : index
      %79 = vector.load %arg5[%c0_88, %c0_89, %c0_90] : memref<1x8x224xf32, #tpu.memory_space<vmem>>, vector<1x8x224xf32>
      %80 = vector.shape_cast %79 : vector<1x8x224xf32> to vector<8x224xf32>
      %81 = vector.shape_cast %78 : vector<8x224xf32> to vector<1x8x224xf32>
      tpu.vector_store %arg5[%c0_88, %c0_89, %c0_90], %81 {strides = array<i32>} : memref<1x8x224xf32, #tpu.memory_space<vmem>>, vector<1x8x224xf32>,
    } else {
    }
    return
  }
  func.func @transform_0(%arg0: i32, %arg1: i32, %arg2: i32) -> (i32, i32, i32) {
    %c0_i32 = arith.constant 0 : i32
    %c0_i32_0 = arith.constant 0 : i32
    return %c0_i32, %arg1, %arg2 : i32, i32, i32
  }
  func.func @transform_1(%arg0: i32, %arg1: i32, %arg2: i32) -> (i32, i32, i32) {
    %c0_i32 = arith.constant 0 : i32
    %c0_i32_0 = arith.constant 0 : i32
    return %arg0, %arg2, %c0_i32 : i32, i32, i32
  }
  func.func @transform_2(%arg0: i32, %arg1: i32, %arg2: i32) -> (i32, i32, i32) {
    %c0_i32 = arith.constant 0 : i32
    %c0_i32_0 = arith.constant 0 : i32
    return %arg0, %arg1, %c0_i32 : i32, i32, i32
  }
}

</mosaic_0001>

<llo_original>
// kernel: cen_conv2d.2
$region0: #{cen_conv2d.2}
  #allocation0 [shape = 'u32[]', space=smem, size = 0x4, offset = 0x4, fixed_abs, tag = 'smem constant byte address 0x4 - core index']
  #allocation1 [shape = 'u32[144,128]{1,0:T(1,128)}', space=vmem, size = 0x12000, scoped, tag = 'internal scratch']
  %s0 = inlined_call_operand.vmem [shape: f32[8,36], index: 0, kind: input, shape index: {}]
  %s1 = inlined_call_operand.vmem [shape: f32[8,36], index: 1, kind: output, shape index: {}]
  %s2 = sld [smem:[#allocation0]]
  $region14: #{cen_conv2d.2} parent=0
    _
  %s4 = ssub.s32 1, %s2
  %s5 = scalar_select 0, %s4, %s2
  // Predicated region
  $region2: #{cen_conv2d.2} parent=0 // pred_check
    _
  $region3: #{cen_conv2d.2} parent=0 // pred_check_branch
    %7 = sbr.rel (0) target = $region5
  $region4: #{cen_conv2d.2} parent=0 // pred_region
    _
  $region5: #{cen_conv2d.2} parent=0 // pred_fallthru
    _
  %v8 = vld [vmem:[%s0] sm:$0xff]
  %vm9 = vcmask 293888
  %v10 = vsel %vm9, %v8, 0.0
  %11 = vadd.xlane.f32.xlu0 %v10
  %v12 = vpop.xlane.xlu0 %11
  %v13 = vrcp.pop 36.0
  %v14 = vmul.f32 %v12, %v13
  %v15 = vsub.f32 %v8, %v14
  %16 = vst.msk [vmem:[%s1] sm:$0xff] %vm9, %v15
  // Predicated region
  $region6: #{cen_conv2d.2} parent=0 // pred_check
    _
  $region7: #{cen_conv2d.2} parent=0 // pred_check_branch
    %18 = sbr.rel (0) target = $region9
  $region8: #{cen_conv2d.2} parent=0 // pred_region
    _
  $region9: #{cen_conv2d.2} parent=0 // pred_fallthru
    _
  // Predicated region
  $region10: #{cen_conv2d.2} parent=0 // pred_check
    _
  $region11: #{cen_conv2d.2} parent=0 // pred_check_branch
    %20 = sbr.rel (0) target = $region13
  $region12: #{cen_conv2d.2} parent=0 // pred_region
    _
  $region13: #{cen_conv2d.2} parent=0 // pred_fallthru
    _

// kernel: cen_conv2d.3
$region0: #{cen_conv2d.3}
  #allocation0 [shape = 'u32[]', space=smem, size = 0x4, offset = 0x4, fixed_abs, tag = 'smem constant byte address 0x4 - core index']
  #allocation1 [shape = 'u32[144,128]{1,0:T(1,128)}', space=vmem, size = 0x12000, scoped, tag = 'internal scratch']
  #allocation2 [shape = 'f32[8,224]{1,0:T(8,128)}', space=vmem, size = 0x2000, scoped, tag = 'scratch operand']
  %s0 = inlined_call_operand.vmem [shape: f32[9,8,8], index: 0, kind: input, shape index: {}]
  %s1 = inlined_call_operand.vmem [shape: f32[2,8,272], index: 1, kind: input, shape index: {}]
  %s2 = inlined_call_operand.vmem [shape: f32[2,8,224], index: 2, kind: output, shape index: {}]
  %s3 = sld [smem:[#allocation0]]
  $region49: #{cen_conv2d.3} parent=0
    _
  %s5 = ssub.s32 1, %s3
  %s6 = scalar_select 0, %s5, %s3
  loop: start=0, step=1, limit=4
  $region2: #{cen_conv2d.3} parent=0 // loop_pre_header
    _
  $region3: #{cen_conv2d.3} parent=0 // loop_header
    %s8 = sphi 0, %s12
    %p9 = scmp.ge.s32.totalorder %s8, 4
    %s15 = sphi 0, %s34
    %s16 = sphi 0, %s30
    %s17 = sphi 0, %s26
    %s18 = sphi 0, %s15
    %s19 = sphi 0, %s16
    %s20 = sphi 0, %s17
    %s21 = sphi 0, %s18
    %s22 = sphi 0, %s19
    %s23 = sphi 0, %s20
    %s39 = sphi 0, %s41
    %s42 = sphi 0, %s39
    %s43 = sphi 0, %s42
    %s59 = sphi 0, %s43
    %s67 = sphi 0, %s69
    %s70 = sphi 0, %s67
    %s71 = sphi 0, %s70
    %s87 = sphi 0, %s71
    %s95 = sphi 0, %s97
    %s98 = sphi 0, %s95
    %s99 = sphi 0, %s98
    %s115 = sphi 0, %s99
  $region4: #{cen_conv2d.3} parent=0 // loop_header_branch
    %11 = sbr.rel (%p9) target = $region8
  $region5: #{cen_conv2d.3} parent=0 // loop_body
    %s13 = ssub.s32 %s8, 1
    %s14 = ssub.s32 %s8, 2
    %s24 = sadd.s32 1, %s17
    %p25 = scmp.ge.s32.totalorder %s24, 1
    %s26 = scalar_select %p25, 0, %s24
    %s27 = sadd.s32 1, %s16
    %s28 = scalar_select %p25, %s27, %s16
    %p29 = scmp.ge.s32.totalorder %s28, 1
    %s30 = scalar_select %p29, 0, %s28
    %s31 = sadd.s32 1, %s15
    %s32 = scalar_select %p29, %s31, %s15
    %p33 = scmp.ge.s32.totalorder %s32, 2
    %s34 = scalar_select %p33, 0, %s32
    %s35 = ssub.s32 %s16, %s30
    %s36 = ssub.s32 %s17, %s26
    %s37 = sor.u32 %s35, %s36
    %p38 = scmp.eq.s32.totalorder %s37, 0
    %s40 = sadd.s32 %s39, 1
    %s41 = scalar_select %p38, %s39, %s40
    %p44 = pneg %p38
    %p45 = scmp.eq.s32.totalorder %s8, 1
    %p46 = por %p44, %p45
    %p47 = scmp.ne.s32.totalorder %s39, %s42
    %p48 = scmp.eq.s32.totalorder %s8, 0
    %p49 = por %p47, %p48
    %p50 = scmp.ne.s32.totalorder %s39, %s42
    %p51 = scmp.eq.s32.totalorder %s13, 1
    %p52 = por %p50, %p51
    %p53 = scmp.ne.s32.totalorder %s42, %s43
    %p54 = scmp.eq.s32.totalorder %s13, 0
    %p55 = por %p53, %p54
    %p56 = scmp.ne.s32.totalorder %s42, %s43
    %p57 = scmp.eq.s32.totalorder %s14, 1
    %p58 = por %p56, %p57
    %p60 = scmp.ne.s32.totalorder %s43, %s59
    %p61 = scmp.eq.s32.totalorder %s14, 0
    %p62 = por %p60, %p61
    %s63 = ssub.s32 %s15, %s34
    %s64 = ssub.s32 %s17, %s26
    %s65 = sor.u32 %s63, %s64
    %p66 = scmp.eq.s32.totalorder %s65, 0
    %s68 = sadd.s32 %s67, 1
    %s69 = scalar_select %p66, %s67, %s68
    %p72 = pneg %p66
    %p73 = scmp.eq.s32.totalorder %s8, 1
    %p74 = por %p72, %p73
    %p75 = scmp.ne.s32.totalorder %s67, %s70
    %p76 = scmp.eq.s32.totalorder %s8, 0
    %p77 = por %p75, %p76
    %p78 = scmp.ne.s32.totalorder %s67, %s70
    %p79 = scmp.eq.s32.totalorder %s13, 1
    %p80 = por %p78, %p79
    %p81 = scmp.ne.s32.totalorder %s70, %s71
    %p82 = scmp.eq.s32.totalorder %s13, 0
    %p83 = por %p81, %p82
    %p84 = scmp.ne.s32.totalorder %s70, %s71
    %p85 = scmp.eq.s32.totalorder %s14, 1
    %p86 = por %p84, %p85
    %p88 = scmp.ne.s32.totalorder %s71, %s87
    %p89 = scmp.eq.s32.totalorder %s14, 0
    %p90 = por %p88, %p89
    %s91 = ssub.s32 %s15, %s34
    %s92 = ssub.s32 %s16, %s30
    %s93 = sor.u32 %s91, %s92
    %p94 = scmp.eq.s32.totalorder %s93, 0
    %s96 = sadd.s32 %s95, 1
    %s97 = scalar_select %p94, %s95, %s96
    %p100 = pneg %p94
    %p101 = scmp.eq.s32.totalorder %s8, 1
    %p102 = por %p100, %p101
    %p103 = scmp.ne.s32.totalorder %s95, %s98
    %p104 = scmp.eq.s32.totalorder %s8, 0
    %p105 = por %p103, %p104
    %p106 = scmp.ne.s32.totalorder %s95, %s98
    %p107 = scmp.eq.s32.totalorder %s13, 1
    %p108 = por %p106, %p107
    %p109 = scmp.ne.s32.totalorder %s98, %s99
    %p110 = scmp.eq.s32.totalorder %s13, 0
    %p111 = por %p109, %p110
    %p112 = scmp.ne.s32.totalorder %s98, %s99
    %p113 = scmp.eq.s32.totalorder %s14, 1
    %p114 = por %p112, %p113
    %p116 = scmp.ne.s32.totalorder %s99, %s115
    %p117 = scmp.eq.s32.totalorder %s14, 0
    %p118 = por %p116, %p117
    %p119 = scmp.le.s32.totalorder 1, %s8
    %p120 = scmp.lt.s32.totalorder %s8, 3
    %p121 = pnand %p119, %p120
    %p122 = pneg %p121
    // Predicated region
    $region9: #{cen_conv2d.3} parent=5 // pred_check
      _
    $region10: #{cen_conv2d.3} parent=5 // pred_check_branch
      %124 = sbr.rel (%p121) target = $region12
    $region11: #{cen_conv2d.3} parent=5 // pred_region
      %s125 = ssub.s32 %s8, 1
      // Predicated region
      $region13: #{cen_conv2d.3} parent=11 // pred_check
        %p126 = pneg %p55
      $region14: #{cen_conv2d.3} parent=11 // pred_check_branch
        %128 = sbr.rel (%p126) target = $region16
      $region15: #{cen_conv2d.3} parent=11 // pred_region
        %p129 = scmp.lt.s32.totalorder %s19, 0
        %s130 = scalar_select %p129, %s19, 0
        %p131 = scmp.lt.s32.totalorder %s20, 0
        %s132 = scalar_select %p131, %s20, 0
        %s133 = sadd.s32 %s132, %s130
        %s134 = smul.addr %s133, 8
        %s135 = scalar_lea.vmem %s0, %s134
      $region16: #{cen_conv2d.3} parent=11 // pred_fallthru
        _
    $region12: #{cen_conv2d.3} parent=5 // pred_fallthru
      _
    %p136 = scmp.lt.s32.totalorder %s8, 2
    // Predicated region
    $region17: #{cen_conv2d.3} parent=5 // pred_check
      %p137 = pneg %p136
    $region18: #{cen_conv2d.3} parent=5 // pred_check_branch
      %139 = sbr.rel (%p137) target = $region20
    $region19: #{cen_conv2d.3} parent=5 // pred_region
      // Predicated region
      $region21: #{cen_conv2d.3} parent=19 // pred_check
        %p140 = pneg %p77
      $region22: #{cen_conv2d.3} parent=19 // pred_check_branch
        %142 = sbr.rel (%p140) target = $region24
      $region23: #{cen_conv2d.3} parent=19 // pred_region
        %p143 = scmp.lt.s32.totalorder %s15, 1
        %s144 = scalar_select %p143, %s15, 1
        %p145 = scmp.lt.s32.totalorder %s17, 0
        %s146 = scalar_select %p145, %s17, 0
        %s147 = smul.addr %s146, 3
        %s148 = smul.addr %s144, 3
        %s149 = sadd.s32 %s147, %s148
        %s150 = smul.addr %s149, 8
        %s151 = scalar_lea.vmem %s1, %s150
      $region24: #{cen_conv2d.3} parent=19 // pred_fallthru
        _
    $region20: #{cen_conv2d.3} parent=5 // pred_fallthru
      _
    %p152 = scmp.le.s32.totalorder 1, %s8
    %p153 = scmp.lt.s32.totalorder %s8, 3
    %p154 = pnand %p152, %p153
    %p155 = pneg %p154
    // Predicated region
    $region25: #{cen_conv2d.3} parent=5 // pred_check
      _
    $region26: #{cen_conv2d.3} parent=5 // pred_check_branch
      %157 = sbr.rel (%p154) target = $region28
    $region27: #{cen_conv2d.3} parent=5 // pred_region
      %s158 = ssub.s32 %s8, 1
      %p159 = scmp.lt.s32.totalorder %s19, 0
      %s160 = scalar_select %p159, %s19, 0
      %p161 = scmp.lt.s32.totalorder %s20, 0
      %s162 = scalar_select %p161, %s20, 0
      %s163 = sadd.s32 %s162, %s160
      %s164 = smul.addr %s163, 8
      %s165 = scalar_lea.vmem %s0, %s164
      %p166 = pneg %p55
      %p167 = pneg %p52
      %p168 = scmp.lt.s32.totalorder %s18, 1
      %s169 = scalar_select %p168, %s18, 1
      %p170 = scmp.lt.s32.totalorder %s20, 0
      %s171 = scalar_select %p170, %s20, 0
      %s172 = smul.addr %s171, 3
      %s173 = smul.addr %s169, 3
      %s174 = sadd.s32 %s172, %s173
      %s175 = smul.addr %s174, 8
      %s176 = scalar_lea.vmem %s1, %s175
      %p177 = pneg %p83
      %p178 = pneg %p80
      %p179 = pneg %p111
      %p180 = pneg %p108
      %p181 = scmp.lt.s32.totalorder %s18, 1
      %s182 = scalar_select %p181, %s18, 1
      %p183 = scmp.lt.s32.totalorder %s19, 0
      %s184 = scalar_select %p183, %s19, 0
      %s185 = smul.addr %s184, 2
      %s186 = smul.addr %s182, 2
      %s187 = sadd.s32 %s185, %s186
      %s188 = smul.addr %s187, 8
      %s189 = scalar_lea.vmem %s2, %s188
      %p190 = scmp.lt.s32.totalorder %s19, 0
      %s191 = scalar_select %p190, %s19, 0
      %p192 = scmp.lt.s32.totalorder %s20, 0
      %s193 = scalar_select %p192, %s20, 0
      %s194 = sadd.s32 %s193, %s191
      %s195 = smul.addr %s194, 8
      %s196 = scalar_lea.vmem %s0, %s195
      %p197 = scmp.lt.s32.totalorder %s18, 1
      %s198 = scalar_select %p197, %s18, 1
      %p199 = scmp.lt.s32.totalorder %s20, 0
      %s200 = scalar_select %p199, %s20, 0
      %s201 = smul.addr %s200, 3
      %s202 = smul.addr %s198, 3
      %s203 = sadd.s32 %s201, %s202
      %s204 = smul.addr %s203, 8
      %s205 = scalar_lea.vmem %s1, %s204
      %p206 = scmp.lt.s32.totalorder %s18, 1
      %s207 = scalar_select %p206, %s18, 1
      %p208 = scmp.lt.s32.totalorder %s19, 0
      %s209 = scalar_select %p208, %s19, 0
      %s210 = smul.addr %s209, 2
      %s211 = smul.addr %s207, 2
      %s212 = sadd.s32 %s210, %s211
      %s213 = smul.addr %s212, 8
      %s214 = scalar_lea.vmem %s2, %s213
      %p215 = scmp.eq.s32.totalorder %s20, 0
      // Predicated region
      $region29: #{cen_conv2d.3} parent=27 // pred_check
        %p216 = pneg %p215
      $region30: #{cen_conv2d.3} parent=27 // pred_check_branch
        %218 = sbr.rel (%p216) target = $region32
      $region31: #{cen_conv2d.3} parent=27 // pred_region
        %219 = vst [vmem:[#allocation2] sm:$0xff] 0.0
        %vm220 = vcmask 785408
        %221 = vst.msk [vmem:[#allocation2 + $0x8] sm:$0xff] %vm220, 0.0
      $region32: #{cen_conv2d.3} parent=27 // pred_fallthru
        _
      %v222 = vld [vmem:[#allocation2] sm:$0xff]
      %v223 = vld [vmem:[#allocation2 + $0x8] sm:$0xff]
      %v224 = vld [vmem:[%s196] sm:$0xff]
      %v225 = vld [vmem:[%s205] sm:$0xff]
      %v226 = vld [vmem:[%s205 + $0x8] sm:$0xff]
      %vm227 = vcmask 64512
      %v229 = vsel %vm227, %v224, 0
      %231 = vmatprep.subr.mxu0 %v226
      %232 = vmatpush1.msra.mxu0 %v225
      %233 = vmatprep.subr.mxu0 0.0
      %234 = vmatpush1.msra.mxu0 0.0
      %235 = vmatprep.subr.mxu0 0.0
      %236 = vmatpush1.msra.mxu0 0.0
      %237 = vmatprep.subr.mxu0 0.0
      %238 = vmatpush1.msra.mxu0 0.0
      %239 = vmatprep.subr.mxu0 0.0
      %240 = vmatpush1.msra.mxu0 0.0
      %241 = vmatprep.subr.mxu0 0.0
      %242 = vmatpush1.msra.mxu0 0.0
      %243 = vmatprep.subr.mxu0 0.0
      %244 = vmatpush1.msra.mxu0 0.0
      %245 = vmatprep.subr.mxu0 0.0
      %246 = vmatpush1.msra.mxu0 0.0
      %247 = vmatprep.subr.mxu0 0.0
      %248 = vmatpush1.msra.mxu0 0.0
      %249 = vmatprep.subr.mxu0 0.0
      %250 = vmatpush1.msra.mxu0 0.0
      %251 = vmatprep.subr.mxu0 0.0
      %252 = vmatpush1.msra.mxu0 0.0
      %253 = vmatprep.subr.mxu0 0.0
      %254 = vmatpush1.msra.mxu0 0.0
      %255 = vmatprep.subr.mxu0 0.0
      %256 = vmatpush1.msra.mxu0 0.0
      %257 = vmatprep.subr.mxu0 0.0
      %258 = vmatpush1.msra.mxu0 0.0
      %259 = vmatprep.subr.mxu0 0.0
      %260 = vmatpush1.msra.mxu0 0.0
      %261 = vmatprep.subr.mxu0 0.0
      %262 = vmatpush1.msra.mxu0 0.0
      %263 = vmatprep.subr.mxu0 0.0
      %264 = vmatpush1.msra.mxu0 0.0
      %265 = vmatprep.subr.mxu0 0.0
      %266 = vmatpush1.msra.mxu0 0.0
      %267 = vmatprep.subr.mxu0 0.0
      %268 = vmatpush1.msra.mxu0 0.0
      %269 = vmatprep.subr.mxu0 0.0
      %270 = vmatpush1.msra.mxu0 0.0
      %271 = vmatprep.subr.mxu0 0.0
      %272 = vmatpush1.msra.mxu0 0.0
      %273 = vmatprep.subr.mxu0 0.0
      %274 = vmatpush1.msra.mxu0 0.0
      %275 = vmatprep.subr.mxu0 0.0
      %276 = vmatpush1.msra.mxu0 0.0
      %277 = vmatprep.subr.mxu0 0.0
      %278 = vmatpush1.msra.mxu0 0.0
      %279 = vmatprep.subr.mxu0 0.0
      %280 = vmatpush1.msra.mxu0 0.0
      %281 = vmatprep.subr.mxu0 0.0
      %282 = vmatpush1.msra.mxu0 0.0
      %283 = vmatprep.subr.mxu0 0.0
      %284 = vmatpush1.msra.mxu0 0.0
      %285 = vmatprep.subr.mxu0 0.0
      %286 = vmatpush1.msra.mxu0 0.0
      %287 = vmatprep.subr.mxu0 0.0
      %288 = vmatpush1.msra.mxu0 0.0
      %289 = vmatprep.subr.mxu0 0.0
      %290 = vmatpush1.msra.mxu0 0.0
      %291 = vmatprep.subr.mxu0 0.0
      %292 = vmatpush1.msra.mxu0 0.0
      %293 = vmatprep.subr.mxu0 0.0
      %294 = vmatpush1.msra.mxu0 0.0
      %295 = vmatprep.mubr.f32.mxu0 0.0
      %296 = vmatmul.mubr.f32.gmra.mrb[0].mxu0 %v229
      %v297 = vpop.f32.mrb[0].mxu0
      %v298 = vadd.f32 0.0, %v297
      %v299 = vpop.f32.mrb[0].mxu0
      %v300 = vadd.f32 0.0, %v299
      %301 = vdwg.mxu0
      %v302 = vadd.f32 %v222, %v298
      %v303 = vadd.f32 %v223, %v300
      %304 = vst [vmem:[#allocation2] sm:$0xff] %v302
      %vm305 = vcmask 785408
      %306 = vst.msk [vmem:[#allocation2 + $0x8] sm:$0xff] %vm305, %v303
      %v307 = vld [vmem:[#allocation2] sm:$0xff]
      %v308 = vld [vmem:[#allocation2 + $0x8] sm:$0xff]
      %s309 = scalar_lea.vmem %s196, 8
      %v310 = vld [vmem:[%s309] sm:$0xff]
      %v311 = vld [vmem:[%s205] sm:$0xff]
      %v312 = vld [vmem:[%s205 + $0x8] sm:$0xff]
      %315 = vrot.lane.b32.xlu0 %v311, 127
      %v316 = vpop.permute.xlu0 %315
      %317 = vrot.lane.b32.xlu0 %v312, 127
      %v318 = vpop.permute.xlu0 %317
      %vm319 = vcmask 1039360
      %v320 = vsel %vm319, %v316, %v318
      %v324 = vsel %vm227, %v310, 0
      %326 = vmatprep.subr.mxu0 %v318
      %327 = vmatpush1.msra.mxu0 %v320
      %328 = vmatprep.subr.mxu0 0.0
      %329 = vmatpush1.msra.mxu0 0.0
      %330 = vmatprep.subr.mxu0 0.0
      %331 = vmatpush1.msra.mxu0 0.0
      %332 = vmatprep.subr.mxu0 0.0
      %333 = vmatpush1.msra.mxu0 0.0
      %334 = vmatprep.subr.mxu0 0.0
      %335 = vmatpush1.msra.mxu0 0.0
      %336 = vmatprep.subr.mxu0 0.0
      %337 = vmatpush1.msra.mxu0 0.0
      %338 = vmatprep.subr.mxu0 0.0
      %339 = vmatpush1.msra.mxu0 0.0
      %340 = vmatprep.subr.mxu0 0.0
      %341 = vmatpush1.msra.mxu0 0.0
      %342 = vmatprep.subr.mxu0 0.0
      %343 = vmatpush1.msra.mxu0 0.0
      %344 = vmatprep.subr.mxu0 0.0
      %345 = vmatpush1.msra.mxu0 0.0
      %346 = vmatprep.subr.mxu0 0.0
      %347 = vmatpush1.msra.mxu0 0.0
      %348 = vmatprep.subr.mxu0 0.0
      %349 = vmatpush1.msra.mxu0 0.0
      %350 = vmatprep.subr.mxu0 0.0
      %351 = vmatpush1.msra.mxu0 0.0
      %352 = vmatprep.subr.mxu0 0.0
      %353 = vmatpush1.msra.mxu0 0.0
      %354 = vmatprep.subr.mxu0 0.0
      %355 = vmatpush1.msra.mxu0 0.0
      %356 = vmatprep.subr.mxu0 0.0
      %357 = vmatpush1.msra.mxu0 0.0
      %358 = vmatprep.subr.mxu0 0.0
      %359 = vmatpush1.msra.mxu0 0.0
      %360 = vmatprep.subr.mxu0 0.0
      %361 = vmatpush1.msra.mxu0 0.0
      %362 = vmatprep.subr.mxu0 0.0
      %363 = vmatpush1.msra.mxu0 0.0
      %364 = vmatprep.subr.mxu0 0.0
      %365 = vmatpush1.msra.mxu0 0.0
      %366 = vmatprep.subr.mxu0 0.0
      %367 = vmatpush1.msra.mxu0 0.0
      %368 = vmatprep.subr.mxu0 0.0
      %369 = vmatpush1.msra.mxu0 0.0
      %370 = vmatprep.subr.mxu0 0.0
      %371 = vmatpush1.msra.mxu0 0.0
      %372 = vmatprep.subr.mxu0 0.0
      %373 = vmatpush1.msra.mxu0 0.0
      %374 = vmatprep.subr.mxu0 0.0
      %375 = vmatpush1.msra.mxu0 0.0
      %376 = vmatprep.subr.mxu0 0.0
      %377 = vmatpush1.msra.mxu0 0.0
      %378 = vmatprep.subr.mxu0 0.0
      %379 = vmatpush1.msra.mxu0 0.0
      %380 = vmatprep.subr.mxu0 0.0
      %381 = vmatpush1.msra.mxu0 0.0
      %382 = vmatprep.subr.mxu0 0.0
      %383 = vmatpush1.msra.mxu0 0.0
      %384 = vmatprep.subr.mxu0 0.0
      %385 = vmatpush1.msra.mxu0 0.0
      %386 = vmatprep.subr.mxu0 0.0
      %387 = vmatpush1.msra.mxu0 0.0
      %388 = vmatprep.subr.mxu0 0.0
      %389 = vmatpush1.msra.mxu0 0.0
      %390 = vmatprep.mubr.f32.mxu0 0.0
      %391 = vmatmul.mubr.f32.gmra.mrb[0].mxu0 %v324
      %v392 = vpop.f32.mrb[0].mxu0
      %v393 = vadd.f32 0.0, %v392
      %v394 = vpop.f32.mrb[0].mxu0
      %v395 = vadd.f32 0.0, %v394
      %396 = vdwg.mxu0
      %v397 = vadd.f32 %v307, %v393
      %v398 = vadd.f32 %v308, %v395
      %399 = vst [vmem:[#allocation2] sm:$0xff] %v397
      %400 = vst.msk [vmem:[#allocation2 + $0x8] sm:$0xff] %vm305, %v398
      %v401 = vld [vmem:[#allocation2] sm:$0xff]
      %v402 = vld [vmem:[#allocation2 + $0x8] sm:$0xff]
      %s403 = scalar_lea.vmem %s196, 16
      %v404 = vld [vmem:[%s403] sm:$0xff]
      %v405 = vld [vmem:[%s205] sm:$0xff]
      %v406 = vld [vmem:[%s205 + $0x8] sm:$0xff]
      %409 = vrot.lane.b32.xlu0 %v405, 126
      %v410 = vpop.permute.xlu0 %409
      %411 = vrot.lane.b32.xlu0 %v406, 126
      %v412 = vpop.permute.xlu0 %411
      %vm413 = vcmask 1031168
      %v414 = vsel %vm413, %v410, %v412
      %v418 = vsel %vm227, %v404, 0
      %420 = vmatprep.subr.mxu0 %v412
      %421 = vmatpush1.msra.mxu0 %v414
      %422 = vmatprep.subr.mxu0 0.0
      %423 = vmatpush1.msra.mxu0 0.0
      %424 = vmatprep.subr.mxu0 0.0
      %425 = vmatpush1.msra.mxu0 0.0
      %426 = vmatprep.subr.mxu0 0.0
      %427 = vmatpush1.msra.mxu0 0.0
      %428 = vmatprep.subr.mxu0 0.0
      %429 = vmatpush1.msra.mxu0 0.0
      %430 = vmatprep.subr.mxu0 0.0
      %431 = vmatpush1.msra.mxu0 0.0
      %432 = vmatprep.subr.mxu0 0.0
      %433 = vmatpush1.msra.mxu0 0.0
      %434 = vmatprep.subr.mxu0 0.0
      %435 = vmatpush1.msra.mxu0 0.0
      %436 = vmatprep.subr.mxu0 0.0
      %437 = vmatpush1.msra.mxu0 0.0
      %438 = vmatprep.subr.mxu0 0.0
      %439 = vmatpush1.msra.mxu0 0.0
      %440 = vmatprep.subr.mxu0 0.0
      %441 = vmatpush1.msra.mxu0 0.0
      %442 = vmatprep.subr.mxu0 0.0
      %443 = vmatpush1.msra.mxu0 0.0
      %444 = vmatprep.subr.mxu0 0.0
      %445 = vmatpush1.msra.mxu0 0.0
      %446 = vmatprep.subr.mxu0 0.0
      %447 = vmatpush1.msra.mxu0 0.0
      %448 = vmatprep.subr.mxu0 0.0
      %449 = vmatpush1.msra.mxu0 0.0
      %450 = vmatprep.subr.mxu0 0.0
      %451 = vmatpush1.msra.mxu0 0.0
      %452 = vmatprep.subr.mxu0 0.0
      %453 = vmatpush1.msra.mxu0 0.0
      %454 = vmatprep.subr.mxu0 0.0
      %455 = vmatpush1.msra.mxu0 0.0
      %456 = vmatprep.subr.mxu0 0.0
      %457 = vmatpush1.msra.mxu0 0.0
      %458 = vmatprep.subr.mxu0 0.0
      %459 = vmatpush1.msra.mxu0 0.0
      %460 = vmatprep.subr.mxu0 0.0
      %461 = vmatpush1.msra.mxu0 0.0
      %462 = vmatprep.subr.mxu0 0.0
      %463 = vmatpush1.msra.mxu0 0.0
      %464 = vmatprep.subr.mxu0 0.0
      %465 = vmatpush1.msra.mxu0 0.0
      %466 = vmatprep.subr.mxu0 0.0
      %467 = vmatpush1.msra.mxu0 0.0
      %468 = vmatprep.subr.mxu0 0.0
      %469 = vmatpush1.msra.mxu0 0.0
      %470 = vmatprep.subr.mxu0 0.0
      %471 = vmatpush1.msra.mxu0 0.0
      %472 = vmatprep.subr.mxu0 0.0
      %473 = vmatpush1.msra.mxu0 0.0
      %474 = vmatprep.subr.mxu0 0.0
      %475 = vmatpush1.msra.mxu0 0.0
      %476 = vmatprep.subr.mxu0 0.0
      %477 = vmatpush1.msra.mxu0 0.0
      %478 = vmatprep.subr.mxu0 0.0
      %479 = vmatpush1.msra.mxu0 0.0
      %480 = vmatprep.subr.mxu0 0.0
      %481 = vmatpush1.msra.mxu0 0.0
      %482 = vmatprep.subr.mxu0 0.0
      %483 = vmatpush1.msra.mxu0 0.0
      %484 = vmatprep.mubr.f32.mxu0 0.0
      %485 = vmatmul.mubr.f32.gmra.mrb[0].mxu0 %v418
      %v486 = vpop.f32.mrb[0].mxu0
      %v487 = vadd.f32 0.0, %v486
      %v488 = vpop.f32.mrb[0].mxu0
      %v489 = vadd.f32 0.0, %v488
      %490 = vdwg.mxu0
      %v491 = vadd.f32 %v401, %v487
      %v492 = vadd.f32 %v402, %v489
      %493 = vst [vmem:[#allocation2] sm:$0xff] %v491
      %494 = vst.msk [vmem:[#allocation2 + $0x8] sm:$0xff] %vm305, %v492
      %v495 = vld [vmem:[#allocation2] sm:$0xff]
      %v496 = vld [vmem:[#allocation2 + $0x8] sm:$0xff]
      %s497 = scalar_lea.vmem %s196, 24
      %v498 = vld [vmem:[%s497] sm:$0xff]
      %v499 = vld [vmem:[%s205] sm:$0xff]
      %v500 = vld [vmem:[%s205 + $0x8] sm:$0xff]
      %503 = vrot.lane.b32.xlu0 %v499, 112
      %v504 = vpop.permute.xlu0 %503
      %505 = vrot.lane.b32.xlu0 %v500, 112
      %v506 = vpop.permute.xlu0 %505
      %vm507 = vcmask 916480
      %v508 = vsel %vm507, %v504, %v506
      %v512 = vsel %vm227, %v498, 0
      %514 = vmatprep.subr.mxu0 %v506
      %515 = vmatpush1.msra.mxu0 %v508
      %516 = vmatprep.subr.mxu0 0.0
      %517 = vmatpush1.msra.mxu0 0.0
      %518 = vmatprep.subr.mxu0 0.0
      %519 = vmatpush1.msra.mxu0 0.0
      %520 = vmatprep.subr.mxu0 0.0
      %521 = vmatpush1.msra.mxu0 0.0
      %522 = vmatprep.subr.mxu0 0.0
      %523 = vmatpush1.msra.mxu0 0.0
      %524 = vmatprep.subr.mxu0 0.0
      %525 = vmatpush1.msra.mxu0 0.0
      %526 = vmatprep.subr.mxu0 0.0
      %527 = vmatpush1.msra.mxu0 0.0
      %528 = vmatprep.subr.mxu0 0.0
      %529 = vmatpush1.msra.mxu0 0.0
      %530 = vmatprep.subr.mxu0 0.0
      %531 = vmatpush1.msra.mxu0 0.0
      %532 = vmatprep.subr.mxu0 0.0
      %533 = vmatpush1.msra.mxu0 0.0
      %534 = vmatprep.subr.mxu0 0.0
      %535 = vmatpush1.msra.mxu0 0.0
      %536 = vmatprep.subr.mxu0 0.0
      %537 = vmatpush1.msra.mxu0 0.0
      %538 = vmatprep.subr.mxu0 0.0
      %539 = vmatpush1.msra.mxu0 0.0
      %540 = vmatprep.subr.mxu0 0.0
      %541 = vmatpush1.msra.mxu0 0.0
      %542 = vmatprep.subr.mxu0 0.0
      %543 = vmatpush1.msra.mxu0 0.0
      %544 = vmatprep.subr.mxu0 0.0
      %545 = vmatpush1.msra.mxu0 0.0
      %546 = vmatprep.subr.mxu0 0.0
      %547 = vmatpush1.msra.mxu0 0.0
      %548 = vmatprep.subr.mxu0 0.0
      %549 = vmatpush1.msra.mxu0 0.0
      %550 = vmatprep.subr.mxu0 0.0
      %551 = vmatpush1.msra.mxu0 0.0
      %552 = vmatprep.subr.mxu0 0.0
      %553 = vmatpush1.msra.mxu0 0.0
      %554 = vmatprep.subr.mxu0 0.0
      %555 = vmatpush1.msra.mxu0 0.0
      %556 = vmatprep.subr.mxu0 0.0
      %557 = vmatpush1.msra.mxu0 0.0
      %558 = vmatprep.subr.mxu0 0.0
      %559 = vmatpush1.msra.mxu0 0.0
      %560 = vmatprep.subr.mxu0 0.0
      %561 = vmatpush1.msra.mxu0 0.0
      %562 = vmatprep.subr.mxu0 0.0
      %563 = vmatpush1.msra.mxu0 0.0
      %564 = vmatprep.subr.mxu0 0.0
      %565 = vmatpush1.msra.mxu0 0.0
      %566 = vmatprep.subr.mxu0 0.0
      %567 = vmatpush1.msra.mxu0 0.0
      %568 = vmatprep.subr.mxu0 0.0
      %569 = vmatpush1.msra.mxu0 0.0
      %570 = vmatprep.subr.mxu0 0.0
      %571 = vmatpush1.msra.mxu0 0.0
      %572 = vmatprep.subr.mxu0 0.0
      %573 = vmatpush1.msra.mxu0 0.0
      %574 = vmatprep.subr.mxu0 0.0
      %575 = vmatpush1.msra.mxu0 0.0
      %576 = vmatprep.subr.mxu0 0.0
      %577 = vmatpush1.msra.mxu0 0.0
      %578 = vmatprep.mubr.f32.mxu0 0.0
      %579 = vmatmul.mubr.f32.gmra.mrb[0].mxu0 %v512
      %v580 = vpop.f32.mrb[0].mxu0
      %v581 = vadd.f32 0.0, %v580
      %v582 = vpop.f32.mrb[0].mxu0
      %v583 = vadd.f32 0.0, %v582
      %584 = vdwg.mxu0
      %v585 = vadd.f32 %v495, %v581
      %v586 = vadd.f32 %v496, %v583
      %587 = vst [vmem:[#allocation2] sm:$0xff] %v585
      %588 = vst.msk [vmem:[#allocation2 + $0x8] sm:$0xff] %vm305, %v586
      %v589 = vld [vmem:[#allocation2] sm:$0xff]
      %v590 = vld [vmem:[#allocation2 + $0x8] sm:$0xff]
      %s591 = scalar_lea.vmem %s196, 32
      %v592 = vld [vmem:[%s591] sm:$0xff]
      %v593 = vld [vmem:[%s205] sm:$0xff]
      %v594 = vld [vmem:[%s205 + $0x8] sm:$0xff]
      %597 = vrot.lane.b32.xlu0 %v593, 111
      %v598 = vpop.permute.xlu0 %597
      %599 = vrot.lane.b32.xlu0 %v594, 111
      %v600 = vpop.permute.xlu0 %599
      %vm601 = vcmask 908288
      %v602 = vsel %vm601, %v598, %v600
      %v606 = vsel %vm227, %v592, 0
      %608 = vmatprep.subr.mxu0 %v600
      %609 = vmatpush1.msra.mxu0 %v602
      %610 = vmatprep.subr.mxu0 0.0
      %611 = vmatpush1.msra.mxu0 0.0
      %612 = vmatprep.subr.mxu0 0.0
      %613 = vmatpush1.msra.mxu0 0.0
      %614 = vmatprep.subr.mxu0 0.0
      %615 = vmatpush1.msra.mxu0 0.0
      %616 = vmatprep.subr.mxu0 0.0
      %617 = vmatpush1.msra.mxu0 0.0
      %618 = vmatprep.subr.mxu0 0.0
      %619 = vmatpush1.msra.mxu0 0.0
      %620 = vmatprep.subr.mxu0 0.0
      %621 = vmatpush1.msra.mxu0 0.0
      %622 = vmatprep.subr.mxu0 0.0
      %623 = vmatpush1.msra.mxu0 0.0
      %624 = vmatprep.subr.mxu0 0.0
      %625 = vmatpush1.msra.mxu0 0.0
      %626 = vmatprep.subr.mxu0 0.0
      %627 = vmatpush1.msra.mxu0 0.0
      %628 = vmatprep.subr.mxu0 0.0
      %629 = vmatpush1.msra.mxu0 0.0
      %630 = vmatprep.subr.mxu0 0.0
      %631 = vmatpush1.msra.mxu0 0.0
      %632 = vmatprep.subr.mxu0 0.0
      %633 = vmatpush1.msra.mxu0 0.0
      %634 = vmatprep.subr.mxu0 0.0
      %635 = vmatpush1.msra.mxu0 0.0
      %636 = vmatprep.subr.mxu0 0.0
      %637 = vmatpush1.msra.mxu0 0.0
      %638 = vmatprep.subr.mxu0 0.0
      %639 = vmatpush1.msra.mxu0 0.0
      %640 = vmatprep.subr.mxu0 0.0
      %641 = vmatpush1.msra.mxu0 0.0
      %642 = vmatprep.subr.mxu0 0.0
      %643 = vmatpush1.msra.mxu0 0.0
      %644 = vmatprep.subr.mxu0 0.0
      %645 = vmatpush1.msra.mxu0 0.0
      %646 = vmatprep.subr.mxu0 0.0
      %647 = vmatpush1.msra.mxu0 0.0
      %648 = vmatprep.subr.mxu0 0.0
      %649 = vmatpush1.msra.mxu0 0.0
      %650 = vmatprep.subr.mxu0 0.0
      %651 = vmatpush1.msra.mxu0 0.0
      %652 = vmatprep.subr.mxu0 0.0
      %653 = vmatpush1.msra.mxu0 0.0
      %654 = vmatprep.subr.mxu0 0.0
      %655 = vmatpush1.msra.mxu0 0.0
      %656 = vmatprep.subr.mxu0 0.0
      %657 = vmatpush1.msra.mxu0 0.0
      %658 = vmatprep.subr.mxu0 0.0
      %659 = vmatpush1.msra.mxu0 0.0
      %660 = vmatprep.subr.mxu0 0.0
      %661 = vmatpush1.msra.mxu0 0.0
      %662 = vmatprep.subr.mxu0 0.0
      %663 = vmatpush1.msra.mxu0 0.0
      %664 = vmatprep.subr.mxu0 0.0
      %665 = vmatpush1.msra.mxu0 0.0
      %666 = vmatprep.subr.mxu0 0.0
      %667 = vmatpush1.msra.mxu0 0.0
      %668 = vmatprep.subr.mxu0 0.0
      %669 = vmatpush1.msra.mxu0 0.0
      %670 = vmatprep.subr.mxu0 0.0
      %671 = vmatpush1.msra.mxu0 0.0
      %672 = vmatprep.mubr.f32.mxu0 0.0
      %673 = vmatmul.mubr.f32.gmra.mrb[0].mxu0 %v606
      %v674 = vpop.f32.mrb[0].mxu0
      %v675 = vadd.f32 0.0, %v674
      %v676 = vpop.f32.mrb[0].mxu0
      %v677 = vadd.f32 0.0, %v676
      %678 = vdwg.mxu0
      %v679 = vadd.f32 %v589, %v675
      %v680 = vadd.f32 %v590, %v677
      %681 = vst [vmem:[#allocation2] sm:$0xff] %v679
      %682 = vst.msk [vmem:[#allocation2 + $0x8] sm:$0xff] %vm305, %v680
      %v683 = vld [vmem:[#allocation2] sm:$0xff]
      %v684 = vld [vmem:[#allocation2 + $0x8] sm:$0xff]
      %s685 = scalar_lea.vmem %s196, 40
      %v686 = vld [vmem:[%s685] sm:$0xff]
      %v687 = vld [vmem:[%s205] sm:$0xff]
      %v688 = vld [vmem:[%s205 + $0x8] sm:$0xff]
      %691 = vrot.lane.b32.xlu0 %v687, 110
      %v692 = vpop.permute.xlu0 %691
      %693 = vrot.lane.b32.xlu0 %v688, 110
      %v694 = vpop.permute.xlu0 %693
      %vm695 = vcmask 900096
      %v696 = vsel %vm695, %v692, %v694
      %v700 = vsel %vm227, %v686, 0
      %702 = vmatprep.subr.mxu0 %v694
      %703 = vmatpush1.msra.mxu0 %v696
      %704 = vmatprep.subr.mxu0 0.0
      %705 = vmatpush1.msra.mxu0 0.0
      %706 = vmatprep.subr.mxu0 0.0
      %707 = vmatpush1.msra.mxu0 0.0
      %708 = vmatprep.subr.mxu0 0.0
      %709 = vmatpush1.msra.mxu0 0.0
      %710 = vmatprep.subr.mxu0 0.0
      %711 = vmatpush1.msra.mxu0 0.0
      %712 = vmatprep.subr.mxu0 0.0
      %713 = vmatpush1.msra.mxu0 0.0
      %714 = vmatprep.subr.mxu0 0.0
      %715 = vmatpush1.msra.mxu0 0.0
      %716 = vmatprep.subr.mxu0 0.0
      %717 = vmatpush1.msra.mxu0 0.0
      %718 = vmatprep.subr.mxu0 0.0
      %719 = vmatpush1.msra.mxu0 0.0
      %720 = vmatprep.subr.mxu0 0.0
      %721 = vmatpush1.msra.mxu0 0.0
      %722 = vmatprep.subr.mxu0 0.0
      %723 = vmatpush1.msra.mxu0 0.0
      %724 = vmatprep.subr.mxu0 0.0
      %725 = vmatpush1.msra.mxu0 0.0
      %726 = vmatprep.subr.mxu0 0.0
      %727 = vmatpush1.msra.mxu0 0.0
      %728 = vmatprep.subr.mxu0 0.0
      %729 = vmatpush1.msra.mxu0 0.0
      %730 = vmatprep.subr.mxu0 0.0
      %731 = vmatpush1.msra.mxu0 0.0
      %732 = vmatprep.subr.mxu0 0.0
      %733 = vmatpush1.msra.mxu0 0.0
      %734 = vmatprep.subr.mxu0 0.0
      %735 = vmatpush1.msra.mxu0 0.0
      %736 = vmatprep.subr.mxu0 0.0
      %737 = vmatpush1.msra.mxu0 0.0
      %738 = vmatprep.subr.mxu0 0.0
      %739 = vmatpush1.msra.mxu0 0.0
      %740 = vmatprep.subr.mxu0 0.0
      %741 = vmatpush1.msra.mxu0 0.0
      %742 = vmatprep.subr.mxu0 0.0
      %743 = vmatpush1.msra.mxu0 0.0
      %744 = vmatprep.subr.mxu0 0.0
      %745 = vmatpush1.msra.mxu0 0.0
      %746 = vmatprep.subr.mxu0 0.0
      %747 = vmatpush1.msra.mxu0 0.0
      %748 = vmatprep.subr.mxu0 0.0
      %749 = vmatpush1.msra.mxu0 0.0
      %750 = vmatprep.subr.mxu0 0.0
      %751 = vmatpush1.msra.mxu0 0.0
      %752 = vmatprep.subr.mxu0 0.0
      %753 = vmatpush1.msra.mxu0 0.0
      %754 = vmatprep.subr.mxu0 0.0
      %755 = vmatpush1.msra.mxu0 0.0
      %756 = vmatprep.subr.mxu0 0.0
      %757 = vmatpush1.msra.mxu0 0.0
      %758 = vmatprep.subr.mxu0 0.0
      %759 = vmatpush1.msra.mxu0 0.0
      %760 = vmatprep.subr.mxu0 0.0
      %761 = vmatpush1.msra.mxu0 0.0
      %762 = vmatprep.subr.mxu0 0.0
      %763 = vmatpush1.msra.mxu0 0.0
      %764 = vmatprep.subr.mxu0 0.0
      %765 = vmatpush1.msra.mxu0 0.0
      %766 = vmatprep.mubr.f32.mxu0 0.0
      %767 = vmatmul.mubr.f32.gmra.mrb[0].mxu0 %v700
      %v768 = vpop.f32.mrb[0].mxu0
      %v769 = vadd.f32 0.0, %v768
      %v770 = vpop.f32.mrb[0].mxu0
      %v771 = vadd.f32 0.0, %v770
      %772 = vdwg.mxu0
      %v773 = vadd.f32 %v683, %v769
      %v774 = vadd.f32 %v684, %v771
      %775 = vst [vmem:[#allocation2] sm:$0xff] %v773
      %776 = vst.msk [vmem:[#allocation2 + $0x8] sm:$0xff] %vm305, %v774
      %v777 = vld [vmem:[#allocation2] sm:$0xff]
      %v778 = vld [vmem:[#allocation2 + $0x8] sm:$0xff]
      %s779 = scalar_lea.vmem %s196, 48
      %v780 = vld [vmem:[%s779] sm:$0xff]
      %v781 = vld [vmem:[%s205] sm:$0xff]
      %v782 = vld [vmem:[%s205 + $0x8] sm:$0xff]
      %785 = vrot.lane.b32.xlu0 %v781, 96
      %v786 = vpop.permute.xlu0 %785
      %787 = vrot.lane.b32.xlu0 %v782, 96
      %v788 = vpop.permute.xlu0 %787
      %v789 = vsel %vm305, %v786, %v788
      %v793 = vsel %vm227, %v780, 0
      %795 = vmatprep.subr.mxu0 %v788
      %796 = vmatpush1.msra.mxu0 %v789
      %797 = vmatprep.subr.mxu0 0.0
      %798 = vmatpush1.msra.mxu0 0.0
      %799 = vmatprep.subr.mxu0 0.0
      %800 = vmatpush1.msra.mxu0 0.0
      %801 = vmatprep.subr.mxu0 0.0
      %802 = vmatpush1.msra.mxu0 0.0
      %803 = vmatprep.subr.mxu0 0.0
      %804 = vmatpush1.msra.mxu0 0.0
      %805 = vmatprep.subr.mxu0 0.0
      %806 = vmatpush1.msra.mxu0 0.0
      %807 = vmatprep.subr.mxu0 0.0
      %808 = vmatpush1.msra.mxu0 0.0
      %809 = vmatprep.subr.mxu0 0.0
      %810 = vmatpush1.msra.mxu0 0.0
      %811 = vmatprep.subr.mxu0 0.0
      %812 = vmatpush1.msra.mxu0 0.0
      %813 = vmatprep.subr.mxu0 0.0
      %814 = vmatpush1.msra.mxu0 0.0
      %815 = vmatprep.subr.mxu0 0.0
      %816 = vmatpush1.msra.mxu0 0.0
      %817 = vmatprep.subr.mxu0 0.0
      %818 = vmatpush1.msra.mxu0 0.0
      %819 = vmatprep.subr.mxu0 0.0
      %820 = vmatpush1.msra.mxu0 0.0
      %821 = vmatprep.subr.mxu0 0.0
      %822 = vmatpush1.msra.mxu0 0.0
      %823 = vmatprep.subr.mxu0 0.0
      %824 = vmatpush1.msra.mxu0 0.0
      %825 = vmatprep.subr.mxu0 0.0
      %826 = vmatpush1.msra.mxu0 0.0
      %827 = vmatprep.subr.mxu0 0.0
      %828 = vmatpush1.msra.mxu0 0.0
      %829 = vmatprep.subr.mxu0 0.0
      %830 = vmatpush1.msra.mxu0 0.0
      %831 = vmatprep.subr.mxu0 0.0
      %832 = vmatpush1.msra.mxu0 0.0
      %833 = vmatprep.subr.mxu0 0.0
      %834 = vmatpush1.msra.mxu0 0.0
      %835 = vmatprep.subr.mxu0 0.0
      %836 = vmatpush1.msra.mxu0 0.0
      %837 = vmatprep.subr.mxu0 0.0
      %838 = vmatpush1.msra.mxu0 0.0
      %839 = vmatprep.subr.mxu0 0.0
      %840 = vmatpush1.msra.mxu0 0.0
      %841 = vmatprep.subr.mxu0 0.0
      %842 = vmatpush1.msra.mxu0 0.0
      %843 = vmatprep.subr.mxu0 0.0
      %844 = vmatpush1.msra.mxu0 0.0
      %845 = vmatprep.subr.mxu0 0.0
      %846 = vmatpush1.msra.mxu0 0.0
      %847 = vmatprep.subr.mxu0 0.0
      %848 = vmatpush1.msra.mxu0 0.0
      %849 = vmatprep.subr.mxu0 0.0
      %850 = vmatpush1.msra.mxu0 0.0
      %851 = vmatprep.subr.mxu0 0.0
      %852 = vmatpush1.msra.mxu0 0.0
      %853 = vmatprep.subr.mxu0 0.0
      %854 = vmatpush1.msra.mxu0 0.0
      %855 = vmatprep.subr.mxu0 0.0
      %856 = vmatpush1.msra.mxu0 0.0
      %857 = vmatprep.subr.mxu0 0.0
      %858 = vmatpush1.msra.mxu0 0.0
      %859 = vmatprep.mubr.f32.mxu0 0.0
      %860 = vmatmul.mubr.f32.gmra.mrb[0].mxu0 %v793
      %v861 = vpop.f32.mrb[0].mxu0
      %v862 = vadd.f32 0.0, %v861
      %v863 = vpop.f32.mrb[0].mxu0
      %v864 = vadd.f32 0.0, %v863
      %865 = vdwg.mxu0
      %v866 = vadd.f32 %v777, %v862
      %v867 = vadd.f32 %v778, %v864
      %868 = vst [vmem:[#allocation2] sm:$0xff] %v866
      %869 = vst.msk [vmem:[#allocation2 + $0x8] sm:$0xff] %vm305, %v867
      %v870 = vld [vmem:[#allocation2] sm:$0xff]
      %v871 = vld [vmem:[#allocation2 + $0x8] sm:$0xff]
      %s872 = scalar_lea.vmem %s196, 56
      %v873 = vld [vmem:[%s872] sm:$0xff]
      %v874 = vld [vmem:[%s205] sm:$0xff]
      %v875 = vld [vmem:[%s205 + $0x8] sm:$0xff]
      %v876 = vld [vmem:[%s205 + $0x10] sm:$0xff]
      %880 = vrot.lane.b32.xlu0 %v874, 95
      %v881 = vpop.permute.xlu0 %880
      %882 = vrot.lane.b32.xlu0 %v875, 95
      %v883 = vpop.permute.xlu0 %882
      %884 = vrot.lane.b32.xlu0 %v876, 95
      %v885 = vpop.permute.xlu0 %884
      %vm886 = vcmask 777216
      %v887 = vsel %vm886, %v881, %v883
      %v888 = vsel %vm886, %v883, %v885
      %v892 = vsel %vm227, %v873, 0
      %894 = vmatprep.subr.mxu0 %v888
      %895 = vmatpush1.msra.mxu0 %v887
      %896 = vmatprep.subr.mxu0 0.0
      %897 = vmatpush1.msra.mxu0 0.0
      %898 = vmatprep.subr.mxu0 0.0
      %899 = vmatpush1.msra.mxu0 0.0
      %900 = vmatprep.subr.mxu0 0.0
      %901 = vmatpush1.msra.mxu0 0.0
      %902 = vmatprep.subr.mxu0 0.0
      %903 = vmatpush1.msra.mxu0 0.0
      %904 = vmatprep.subr.mxu0 0.0
      %905 = vmatpush1.msra.mxu0 0.0
      %906 = vmatprep.subr.mxu0 0.0
      %907 = vmatpush1.msra.mxu0 0.0
      %908 = vmatprep.subr.mxu0 0.0
      %909 = vmatpush1.msra.mxu0 0.0
      %910 = vmatprep.subr.mxu0 0.0
      %911 = vmatpush1.msra.mxu0 0.0
      %912 = vmatprep.subr.mxu0 0.0
      %913 = vmatpush1.msra.mxu0 0.0
      %914 = vmatprep.subr.mxu0 0.0
      %915 = vmatpush1.msra.mxu0 0.0
      %916 = vmatprep.subr.mxu0 0.0
      %917 = vmatpush1.msra.mxu0 0.0
      %918 = vmatprep.subr.mxu0 0.0
      %919 = vmatpush1.msra.mxu0 0.0
      %920 = vmatprep.subr.mxu0 0.0
      %921 = vmatpush1.msra.mxu0 0.0
      %922 = vmatprep.subr.mxu0 0.0
      %923 = vmatpush1.msra.mxu0 0.0
      %924 = vmatprep.subr.mxu0 0.0
      %925 = vmatpush1.msra.mxu0 0.0
      %926 = vmatprep.subr.mxu0 0.0
      %927 = vmatpush1.msra.mxu0 0.0
      %928 = vmatprep.subr.mxu0 0.0
      %929 = vmatpush1.msra.mxu0 0.0
      %930 = vmatprep.subr.mxu0 0.0
      %931 = vmatpush1.msra.mxu0 0.0
      %932 = vmatprep.subr.mxu0 0.0
      %933 = vmatpush1.msra.mxu0 0.0
      %934 = vmatprep.subr.mxu0 0.0
      %935 = vmatpush1.msra.mxu0 0.0
      %936 = vmatprep.subr.mxu0 0.0
      %937 = vmatpush1.msra.mxu0 0.0
      %938 = vmatprep.subr.mxu0 0.0
      %939 = vmatpush1.msra.mxu0 0.0
      %940 = vmatprep.subr.mxu0 0.0
      %941 = vmatpush1.msra.mxu0 0.0
      %942 = vmatprep.subr.mxu0 0.0
      %943 = vmatpush1.msra.mxu0 0.0
      %944 = vmatprep.subr.mxu0 0.0
      %945 = vmatpush1.msra.mxu0 0.0
      %946 = vmatprep.subr.mxu0 0.0
      %947 = vmatpush1.msra.mxu0 0.0
      %948 = vmatprep.subr.mxu0 0.0
      %949 = vmatpush1.msra.mxu0 0.0
      %950 = vmatprep.subr.mxu0 0.0
      %951 = vmatpush1.msra.mxu0 0.0
      %952 = vmatprep.subr.mxu0 0.0
      %953 = vmatpush1.msra.mxu0 0.0
      %954 = vmatprep.subr.mxu0 0.0
      %955 = vmatpush1.msra.mxu0 0.0
      %956 = vmatprep.subr.mxu0 0.0
      %957 = vmatpush1.msra.mxu0 0.0
      %958 = vmatprep.mubr.f32.mxu0 0.0
      %959 = vmatmul.mubr.f32.gmra.mrb[0].mxu0 %v892
      %v960 = vpop.f32.mrb[0].mxu0
      %v961 = vadd.f32 0.0, %v960
      %v962 = vpop.f32.mrb[0].mxu0
      %v963 = vadd.f32 0.0, %v962
      %964 = vdwg.mxu0
      %v965 = vadd.f32 %v870, %v961
      %v966 = vadd.f32 %v871, %v963
      %967 = vst [vmem:[#allocation2] sm:$0xff] %v965
      %968 = vst.msk [vmem:[#allocation2 + $0x8] sm:$0xff] %vm305, %v966
      %v969 = vld [vmem:[#allocation2] sm:$0xff]
      %v970 = vld [vmem:[#allocation2 + $0x8] sm:$0xff]
      %s971 = scalar_lea.vmem %s196, 64
      %v972 = vld [vmem:[%s971] sm:$0xff]
      %v973 = vld [vmem:[%s205] sm:$0xff]
      %v974 = vld [vmem:[%s205 + $0x8] sm:$0xff]
      %v975 = vld [vmem:[%s205 + $0x10] sm:$0xff]
      %979 = vrot.lane.b32.xlu0 %v973, 94
      %v980 = vpop.permute.xlu0 %979
      %981 = vrot.lane.b32.xlu0 %v974, 94
      %v982 = vpop.permute.xlu0 %981
      %983 = vrot.lane.b32.xlu0 %v975, 94
      %v984 = vpop.permute.xlu0 %983
      %vm985 = vcmask 769024
      %v986 = vsel %vm985, %v980, %v982
      %v987 = vsel %vm985, %v982, %v984
      %v991 = vsel %vm227, %v972, 0
      %993 = vmatprep.subr.mxu0 %v987
      %994 = vmatpush1.msra.mxu0 %v986
      %995 = vmatprep.subr.mxu0 0.0
      %996 = vmatpush1.msra.mxu0 0.0
      %997 = vmatprep.subr.mxu0 0.0
      %998 = vmatpush1.msra.mxu0 0.0
      %999 = vmatprep.subr.mxu0 0.0
      %1000 = vmatpush1.msra.mxu0 0.0
      %1001 = vmatprep.subr.mxu0 0.0
      %1002 = vmatpush1.msra.mxu0 0.0
      %1003 = vmatprep.subr.mxu0 0.0
      %1004 = vmatpush1.msra.mxu0 0.0
      %1005 = vmatprep.subr.mxu0 0.0
      %1006 = vmatpush1.msra.mxu0 0.0
      %1007 = vmatprep.subr.mxu0 0.0
      %1008 = vmatpush1.msra.mxu0 0.0
      %1009 = vmatprep.subr.mxu0 0.0
      %1010 = vmatpush1.msra.mxu0 0.0
      %1011 = vmatprep.subr.mxu0 0.0
      %1012 = vmatpush1.msra.mxu0 0.0
      %1013 = vmatprep.subr.mxu0 0.0
      %1014 = vmatpush1.msra.mxu0 0.0
      %1015 = vmatprep.subr.mxu0 0.0
      %1016 = vmatpush1.msra.mxu0 0.0
      %1017 = vmatprep.subr.mxu0 0.0
      %1018 = vmatpush1.msra.mxu0 0.0
      %1019 = vmatprep.subr.mxu0 0.0
      %1020 = vmatpush1.msra.mxu0 0.0
      %1021 = vmatprep.subr.mxu0 0.0
      %1022 = vmatpush1.msra.mxu0 0.0
      %1023 = vmatprep.subr.mxu0 0.0
      %1024 = vmatpush1.msra.mxu0 0.0
      %1025 = vmatprep.subr.mxu0 0.0
      %1026 = vmatpush1.msra.mxu0 0.0
      %1027 = vmatprep.subr.mxu0 0.0
      %1028 = vmatpush1.msra.mxu0 0.0
      %1029 = vmatprep.subr.mxu0 0.0
      %1030 = vmatpush1.msra.mxu0 0.0
      %1031 = vmatprep.subr.mxu0 0.0
      %1032 = vmatpush1.msra.mxu0 0.0
      %1033 = vmatprep.subr.mxu0 0.0
      %1034 = vmatpush1.msra.mxu0 0.0
      %1035 = vmatprep.subr.mxu0 0.0
      %1036 = vmatpush1.msra.mxu0 0.0
      %1037 = vmatprep.subr.mxu0 0.0
      %1038 = vmatpush1.msra.mxu0 0.0
      %1039 = vmatprep.subr.mxu0 0.0
      %1040 = vmatpush1.msra.mxu0 0.0
      %1041 = vmatprep.subr.mxu0 0.0
      %1042 = vmatpush1.msra.mxu0 0.0
      %1043 = vmatprep.subr.mxu0 0.0
      %1044 = vmatpush1.msra.mxu0 0.0
      %1045 = vmatprep.subr.mxu0 0.0
      %1046 = vmatpush1.msra.mxu0 0.0
      %1047 = vmatprep.subr.mxu0 0.0
      %1048 = vmatpush1.msra.mxu0 0.0
      %1049 = vmatprep.subr.mxu0 0.0
      %1050 = vmatpush1.msra.mxu0 0.0
      %1051 = vmatprep.subr.mxu0 0.0
      %1052 = vmatpush1.msra.mxu0 0.0
      %1053 = vmatprep.subr.mxu0 0.0
      %1054 = vmatpush1.msra.mxu0 0.0
      %1055 = vmatprep.subr.mxu0 0.0
      %1056 = vmatpush1.msra.mxu0 0.0
      %1057 = vmatprep.mubr.f32.mxu0 0.0
      %1058 = vmatmul.mubr.f32.gmra.mrb[0].mxu0 %v991
      %v1059 = vpop.f32.mrb[0].mxu0
      %v1060 = vadd.f32 0.0, %v1059
      %v1061 = vpop.f32.mrb[0].mxu0
      %v1062 = vadd.f32 0.0, %v1061
      %1063 = vdwg.mxu0
      %v1064 = vadd.f32 %v969, %v1060
      %v1065 = vadd.f32 %v970, %v1062
      %1066 = vst [vmem:[#allocation2] sm:$0xff] %v1064
      %1067 = vst.msk [vmem:[#allocation2 + $0x8] sm:$0xff] %vm305, %v1065
      // Predicated region
      $region33: #{cen_conv2d.3} parent=27 // pred_check
        %p1068 = pneg %p215
      $region34: #{cen_conv2d.3} parent=27 // pred_check_branch
        %1070 = sbr.rel (%p1068) target = $region36
      $region35: #{cen_conv2d.3} parent=27 // pred_region
        %v1071 = vld [vmem:[#allocation2] sm:$0xff]
        %v1072 = vld [vmem:[#allocation2 + $0x8] sm:$0xff]
        %1073 = vst [vmem:[%s214] sm:$0xff] %v1071
        %1074 = vst.msk [vmem:[%s214 + $0x8] sm:$0xff] %vm305, %v1072
      $region36: #{cen_conv2d.3} parent=27 // pred_fallthru
        _
      %p1075 = scmp.lt.s32.totalorder %s18, 1
      %s1076 = scalar_select %p1075, %s18, 1
      %p1077 = scmp.lt.s32.totalorder %s19, 0
      %s1078 = scalar_select %p1077, %s19, 0
      %s1079 = smul.addr %s1078, 2
      %s1080 = smul.addr %s1076, 2
      %s1081 = sadd.s32 %s1079, %s1080
      %s1082 = smul.addr %s1081, 8
      %s1083 = scalar_lea.vmem %s2, %s1082
      // Predicated region
      $region37: #{cen_conv2d.3} parent=27 // pred_check
        %p1084 = pneg %p108
      $region38: #{cen_conv2d.3} parent=27 // pred_check_branch
        %1086 = sbr.rel (%p1084) target = $region40
      $region39: #{cen_conv2d.3} parent=27 // pred_region
        _
      $region40: #{cen_conv2d.3} parent=27 // pred_fallthru
        _
    $region28: #{cen_conv2d.3} parent=5 // pred_fallthru
      _
    %p1087 = scmp.le.s32.totalorder 2, %s8
    // Predicated region
    $region41: #{cen_conv2d.3} parent=5 // pred_check
      %p1088 = pneg %p1087
    $region42: #{cen_conv2d.3} parent=5 // pred_check_branch
      %1090 = sbr.rel (%p1088) target = $region44
    $region43: #{cen_conv2d.3} parent=5 // pred_region
      %s1091 = ssub.s32 %s8, 2
      // Predicated region
      $region45: #{cen_conv2d.3} parent=43 // pred_check
        %p1092 = pneg %p114
      $region46: #{cen_conv2d.3} parent=43 // pred_check_branch
        %1094 = sbr.rel (%p1092) target = $region48
      $region47: #{cen_conv2d.3} parent=43 // pred_region
        %p1095 = scmp.lt.s32.totalorder %s21, 1
        %s1096 = scalar_select %p1095, %s21, 1
        %p1097 = scmp.lt.s32.totalorder %s22, 0
        %s1098 = scalar_select %p1097, %s22, 0
        %s1099 = smul.addr %s1098, 2
        %s1100 = smul.addr %s1096, 2
        %s1101 = sadd.s32 %s1099, %s1100
        %s1102 = smul.addr %s1101, 8
        %s1103 = scalar_lea.vmem %s2, %s1102
      $region48: #{cen_conv2d.3} parent=43 // pred_fallthru
        _
    $region44: #{cen_conv2d.3} parent=5 // pred_fallthru
      _
  $region6: #{cen_conv2d.3} parent=0 // loop_footer
    %s12 = sadd.s32 1, %s8
  $region7: #{cen_conv2d.3} parent=0 // loop_footer_branch
    %7 = sbr.rel target = $region3
  $region8: #{cen_conv2d.3} parent=0 // loop_exit
    _

</llo_original>
